<compile_context>
chip_gen: v7x
topology: tpu7x:2x2x1
jax: 0.10.0
libtpu: 0.0.40
codegen_flags: <defaults>
</compile_context>

<pallas_src>
import math

import jax
import jax.numpy as jnp
from jax.experimental import pallas as pl
from jax.experimental.pallas import tpu as pltpu


def _attention_kernel(x_ref, w_ref, b_ref, ln_ref, o_ref):
    eps = 1e-5
    BB, N, C = x_ref.shape
    scale = C ** (-0.5)

    x = x_ref[...].astype(jnp.float32)                 # (BB, N, C)
    x2 = x.reshape(BB * N, C)                          # row-wise ops on a slab

    ln = ln_ref[...]                                   # (4, C)
    pre_g, pre_b = ln[0:1, :], ln[1:2, :]              # (1, C) each
    post_g, post_b = ln[2:3, :], ln[3:4, :]

    # ---- pre LayerNorm ------------------------------------------------------
    mu = jnp.mean(x2, axis=-1, keepdims=True)
    var = jnp.mean((x2 - mu) ** 2, axis=-1, keepdims=True)
    xn = (x2 - mu) * jax.lax.rsqrt(var + eps) * pre_g + pre_b      # (BB*N, C)

    # ---- fused QKV projection (one wide matmul) ------------------------------
    qkv = jnp.dot(xn, w_ref[...], preferred_element_type=jnp.float32) + b_ref[...]
    q = qkv[:, 0 * C:1 * C].reshape(BB, N, C)
    k = qkv[:, 1 * C:2 * C].reshape(BB, N, C)
    v = qkv[:, 2 * C:3 * C].reshape(BB, N, C)

    # ---- scaled dot-product attention (nheads == 1), K^T folded into dot -----
    s = jnp.einsum('bqd,bkd->bqk', q, k,
                   preferred_element_type=jnp.float32) * scale     # (BB, N, N)
    s = s - jnp.max(s, axis=-1, keepdims=True)
    p = jnp.exp(s)
    soft = p * pl.reciprocal(jnp.sum(p, axis=-1, keepdims=True), approx=True)
    val = jnp.einsum('bqk,bkd->bqd', soft, v,
                     preferred_element_type=jnp.float32)           # (BB, N, C)
    val2 = val.reshape(BB * N, C)

    # ---- post LayerNorm ------------------------------------------------------
    mu2 = jnp.mean(val2, axis=-1, keepdims=True)
    var2 = jnp.mean((val2 - mu2) ** 2, axis=-1, keepdims=True)
    vn = (val2 - mu2) * jax.lax.rsqrt(var2 + eps) * post_g + post_b

    # ---- residual (uses pre-normalized x, per the original forward) ----------
    o_ref[...] = (xn + vn).reshape(BB, N, C).astype(o_ref.dtype)


def attention_forward(x, params, *, batch_block=None):
    """x: (B, N, C) float32. params: dict with 'w_qkv' (C,3C), 'b_qkv' (1,3C), 'ln' (4,C)."""
    B, N, C = x.shape
    w_qkv = params["w_qkv"]
    b_qkv = params["b_qkv"]
    ln = params["ln"]

    BB = B if batch_block is None else batch_block
    assert B % BB == 0, "batch must be divisible by batch block"

    full2 = lambda shape: pl.BlockSpec(shape, lambda b: (0, 0))

    return pl.pallas_call(
        _attention_kernel,
        out_shape=jax.ShapeDtypeStruct((B, N, C), x.dtype),
        grid=(B // BB,),
        in_specs=[
            pl.BlockSpec((BB, N, C), lambda b: (b, 0, 0)),   # x, tiled over batch blocks
            full2((C, 3 * C)),                               # fused W_qkv^T
            full2((1, 3 * C)),                               # fused bias
            full2((4, C)),                                   # packed LN gamma/beta
        ],
        out_specs=pl.BlockSpec((BB, N, C), lambda b: (b, 0, 0)),
        compiler_params=pltpu.CompilerParams(
            dimension_semantics=("parallel",)),
    )(x, w_qkv, b_qkv, ln)


def init_params(key, ndim):
    """Deterministic parameter init mirroring the module's __init__ shapes."""
    k_w, k_b = jax.random.split(key)
    bound = 1.0 / math.sqrt(ndim)
    # nn.Linear(ndim, 3*ndim): weight (3*ndim, ndim), bias (3*ndim,)
    w_qkv = jax.random.uniform(k_w, (3 * ndim, ndim), jnp.float32, -bound, bound)
    b_qkv = jax.random.uniform(k_b, (3 * ndim,), jnp.float32, -bound, bound)
    # Pre-transpose in the wrapper so the kernel does xn @ W^T; columns are
    # ordered [q | k | v] exactly like the nn.Linear output features.
    w_fused = w_qkv.T                      # (ndim, 3*ndim)
    b_fused = b_qkv.reshape(1, 3 * ndim)
    # LayerNorm default init: gamma = 1, beta = 0; pack [pre_g, pre_b, post_g, post_b].
    ln = jnp.stack([jnp.ones((ndim,), jnp.float32),
                    jnp.zeros((ndim,), jnp.float32),
                    jnp.ones((ndim,), jnp.float32),
                    jnp.zeros((ndim,), jnp.float32)], axis=0)     # (4, ndim)
    # NOTE: self.ffn / self.act exist in __init__ but are unused in forward.
    return dict(w_qkv=w_fused, b_qkv=b_fused, ln=ln)


def reference_forward(x, params):
    """Plain-JAX reference matching the PyTorch forward (nheads=1)."""
    eps = 1e-5
    C = x.shape[-1]
    ln = params["ln"]
    pre_g, pre_b, post_g, post_b = ln[0], ln[1], ln[2], ln[3]

    mu = jnp.mean(x, -1, keepdims=True)
    var = jnp.mean((x - mu) ** 2, -1, keepdims=True)
    xn = (x - mu) / jnp.sqrt(var + eps) * pre_g + pre_b

    qkv = xn @ params["w_qkv"] + params["b_qkv"][0]
    q, k, v = qkv[..., :C], qkv[..., C:2 * C], qkv[..., 2 * C:]

    attn = jnp.einsum("bnd,bmd->bnm", q, k) * (C ** -0.5)
    soft = jax.nn.softmax(attn, axis=-1)
    val = jnp.einsum("bnm,bmd->bnd", soft, v)

    mu2 = jnp.mean(val, -1, keepdims=True)
    var2 = jnp.mean((val - mu2) ** 2, -1, keepdims=True)
    vn = (val - mu2) / jnp.sqrt(var2 + eps) * post_g + post_b
    return xn + vn


if __name__ == "__main__":
    B, N = 2, 8
    input_dim, nheads = 32, 1          # only valid config of the original module
    ndim = input_dim // nheads
    assert input_dim % nheads == 0

    key = jax.random.PRNGKey(0)
    kx, kp = jax.random.split(key)
    x = jax.random.normal(kx, (B, N, input_dim), jnp.float32)
    params = init_params(kp, ndim)

    out = attention_forward(x, params)          # BB = B -> single grid step
    out = jax.block_until_ready(out)

    ref = reference_forward(x, params)
    assert out.shape == (B, N, input_dim)
    # Slightly looser tolerance than f64-exact: approx reciprocal in softmax.
    assert jnp.allclose(out, ref, atol=1e-3, rtol=1e-3), "mismatch vs reference"

    print("KERNEL_OK")
</pallas_src>

<mosaic_0001>
module attributes {stable_mosaic.version = 11 : i64} {
  func.func @_attention_kernel(%arg0: i32, %arg1: memref<2x8x32xf32, #tpu.memory_space<vmem>>, %arg2: memref<32x96xf32, #tpu.memory_space<vmem>>, %arg3: memref<1x96xf32, #tpu.memory_space<vmem>>, %arg4: memref<4x32xf32, #tpu.memory_space<vmem>>, %arg5: memref<2x8x32xf32, #tpu.memory_space<vmem>>) attributes {dimension_semantics = [#tpu.dimension_semantics<parallel>], iteration_bounds = array<i64: 1>, scalar_prefetch = 0 : i64, scratch_operands = 0 : i64, tpu.core_type = #tpu.core_type<tc>, window_params = [{transform_indices = @transform_0, window_bounds = array<i64: 2, 8, 32>}, {pipeline_mode = #tpu.pipeline_mode<synchronous>, transform_indices = @transform_1, window_bounds = array<i64: 32, 96>}, {pipeline_mode = #tpu.pipeline_mode<synchronous>, transform_indices = @transform_2, window_bounds = array<i64: 1, 96>}, {pipeline_mode = #tpu.pipeline_mode<synchronous>, transform_indices = @transform_3, window_bounds = array<i64: 4, 32>}, {transform_indices = @transform_4, window_bounds = array<i64: 2, 8, 32>}]} {
    %c0 = arith.constant 0 : index
    %c0_0 = arith.constant 0 : index
    %c0_1 = arith.constant 0 : index
    %0 = vector.load %arg1[%c0, %c0_0, %c0_1] : memref<2x8x32xf32, #tpu.memory_space<vmem>>, vector<2x8x32xf32>
    %1 = vector.shape_cast %0 : vector<2x8x32xf32> to vector<16x32xf32>
    %c0_2 = arith.constant 0 : index
    %c0_3 = arith.constant 0 : index
    %2 = vector.load %arg4[%c0_2, %c0_3] : memref<4x32xf32, #tpu.memory_space<vmem>>, vector<4x32xf32>
    %3 = vector.extract_strided_slice %2 {offsets = [0, 0], sizes = [1, 32], strides = [1, 1]} : vector<4x32xf32> to vector<1x32xf32>
    %4 = vector.extract_strided_slice %2 {offsets = [1, 0], sizes = [1, 32], strides = [1, 1]} : vector<4x32xf32> to vector<1x32xf32>
    %5 = vector.extract_strided_slice %2 {offsets = [2, 0], sizes = [1, 32], strides = [1, 1]} : vector<4x32xf32> to vector<1x32xf32>
    %6 = vector.extract_strided_slice %2 {offsets = [3, 0], sizes = [1, 32], strides = [1, 1]} : vector<4x32xf32> to vector<1x32xf32>
    %cst = arith.constant dense<0.000000e+00> : vector<16xf32>
    %7 = vector.multi_reduction <add>, %1, %cst [1] : vector<16x32xf32> to vector<16xf32>
    %8 = vector.shape_cast %7 : vector<16xf32> to vector<16x1xf32>
    %cst_4 = arith.constant 3.200000e+01 : f32
    %9 = vector.broadcast %cst_4 : f32 to vector<16x1xf32>
    %10 = arith.divf %8, %9 : vector<16x1xf32>
    %11 = vector.broadcast %10 : vector<16x1xf32> to vector<16x32xf32>
    %12 = arith.subf %1, %11 : vector<16x32xf32>
    %13 = arith.mulf %12, %12 : vector<16x32xf32>
    %cst_5 = arith.constant dense<0.000000e+00> : vector<16xf32>
    %14 = vector.multi_reduction <add>, %13, %cst_5 [1] : vector<16x32xf32> to vector<16xf32>
    %15 = vector.shape_cast %14 : vector<16xf32> to vector<16x1xf32>
    %cst_6 = arith.constant 3.200000e+01 : f32
    %16 = vector.broadcast %cst_6 : f32 to vector<16x1xf32>
    %17 = arith.divf %15, %16 : vector<16x1xf32>
    %18 = vector.broadcast %10 : vector<16x1xf32> to vector<16x32xf32>
    %19 = arith.subf %1, %18 : vector<16x32xf32>
    %cst_7 = arith.constant 9.99999974E-6 : f32
    %20 = vector.broadcast %cst_7 : f32 to vector<16x1xf32>
    %21 = arith.addf %17, %20 : vector<16x1xf32>
    %22 = math.rsqrt %21 : vector<16x1xf32>
    %23 = vector.broadcast %22 : vector<16x1xf32> to vector<16x32xf32>
    %24 = arith.mulf %19, %23 : vector<16x32xf32>
    %25 = vector.broadcast %3 : vector<1x32xf32> to vector<16x32xf32>
    %26 = arith.mulf %24, %25 : vector<16x32xf32>
    %27 = vector.broadcast %4 : vector<1x32xf32> to vector<16x32xf32>
    %28 = arith.addf %26, %27 : vector<16x32xf32>
    %c0_8 = arith.constant 0 : index
    %c0_9 = arith.constant 0 : index
    %29 = vector.load %arg2[%c0_8, %c0_9] : memref<32x96xf32, #tpu.memory_space<vmem>>, vector<32x96xf32>
    %cst_10 = arith.constant dense<0.000000e+00> : vector<16x96xf32>
    %30 = tpu.matmul %28, %29, %cst_10 {dimension_numbers = #tpu.dot_dimension_numbers<[1], [0], [0], [1], [0, 0, 1, 1], [], []>} : vector<16x32xf32>, vector<32x96xf32>, vector<16x96xf32> -> vector<16x96xf32>
    %c0_11 = arith.constant 0 : index
    %c0_12 = arith.constant 0 : index
    %31 = vector.load %arg3[%c0_11, %c0_12] : memref<1x96xf32, #tpu.memory_space<vmem>>, vector<1x96xf32>
    %32 = vector.broadcast %31 : vector<1x96xf32> to vector<16x96xf32>
    %33 = arith.addf %30, %32 : vector<16x96xf32>
    %34 = vector.extract_strided_slice %33 {offsets = [0, 0], sizes = [16, 32], strides = [1, 1]} : vector<16x96xf32> to vector<16x32xf32>
    %35 = vector.shape_cast %34 : vector<16x32xf32> to vector<2x8x32xf32>
    %36 = vector.extract_strided_slice %33 {offsets = [0, 32], sizes = [16, 32], strides = [1, 1]} : vector<16x96xf32> to vector<16x32xf32>
    %37 = vector.shape_cast %36 : vector<16x32xf32> to vector<2x8x32xf32>
    %38 = vector.extract_strided_slice %33 {offsets = [0, 64], sizes = [16, 32], strides = [1, 1]} : vector<16x96xf32> to vector<16x32xf32>
    %39 = vector.shape_cast %38 : vector<16x32xf32> to vector<2x8x32xf32>
    "tpu.trace_start"() <{level = 10 : i32, message = "bqd,bkd->bqk"}> : () -> ()
    %cst_13 = arith.constant dense<0.000000e+00> : vector<2x8x8xf32>
    %40 = tpu.matmul %35, %37, %cst_13 {dimension_numbers = #tpu.dot_dimension_numbers<[2], [2], [1], [1], [0, 0, 0, 1, 1, 1], [0], [0]>} : vector<2x8x32xf32>, vector<2x8x32xf32>, vector<2x8x8xf32> -> vector<2x8x8xf32>
    "tpu.trace_stop"() : () -> ()
    %cst_14 = arith.constant 0.176776692 : f32
    %41 = vector.broadcast %cst_14 : f32 to vector<2x8x8xf32>
    %42 = arith.mulf %40, %41 : vector<2x8x8xf32>
    %cst_15 = arith.constant dense<0xFF800000> : vector<2x8xf32>
    %43 = vector.multi_reduction <maximumf>, %42, %cst_15 [2] : vector<2x8x8xf32> to vector<2x8xf32>
    %44 = vector.shape_cast %43 : vector<2x8xf32> to vector<2x8x1xf32>
    %45 = vector.broadcast %44 : vector<2x8x1xf32> to vector<2x8x8xf32>
    %46 = arith.subf %42, %45 : vector<2x8x8xf32>
    %47 = math.exp %46 : vector<2x8x8xf32>
    %cst_16 = arith.constant dense<0.000000e+00> : vector<2x8xf32>
    %48 = vector.multi_reduction <add>, %47, %cst_16 [2] : vector<2x8x8xf32> to vector<2x8xf32>
    %49 = vector.shape_cast %48 : vector<2x8xf32> to vector<2x8x1xf32>
    %50 = tpu.reciprocal %49 {approx = true} : vector<2x8x1xf32> -> vector<2x8x1xf32>
    %51 = vector.broadcast %50 : vector<2x8x1xf32> to vector<2x8x8xf32>
    %52 = arith.mulf %47, %51 : vector<2x8x8xf32>
    "tpu.trace_start"() <{level = 10 : i32, message = "bqk,bkd->bqd"}> : () -> ()
    %cst_17 = arith.constant dense<0.000000e+00> : vector<2x8x32xf32>
    %53 = tpu.matmul %52, %39, %cst_17 {dimension_numbers = #tpu.dot_dimension_numbers<[2], [1], [1], [2], [0, 0, 0, 1, 1, 2], [0], [0]>} : vector<2x8x8xf32>, vector<2x8x32xf32>, vector<2x8x32xf32> -> vector<2x8x32xf32>
    "tpu.trace_stop"() : () -> ()
    %54 = vector.shape_cast %53 : vector<2x8x32xf32> to vector<16x32xf32>
    %cst_18 = arith.constant dense<0.000000e+00> : vector<16xf32>
    %55 = vector.multi_reduction <add>, %54, %cst_18 [1] : vector<16x32xf32> to vector<16xf32>
    %56 = vector.shape_cast %55 : vector<16xf32> to vector<16x1xf32>
    %cst_19 = arith.constant 3.200000e+01 : f32
    %57 = vector.broadcast %cst_19 : f32 to vector<16x1xf32>
    %58 = arith.divf %56, %57 : vector<16x1xf32>
    %59 = vector.broadcast %58 : vector<16x1xf32> to vector<16x32xf32>
    %60 = arith.subf %54, %59 : vector<16x32xf32>
    %61 = arith.mulf %60, %60 : vector<16x32xf32>
    %cst_20 = arith.constant dense<0.000000e+00> : vector<16xf32>
    %62 = vector.multi_reduction <add>, %61, %cst_20 [1] : vector<16x32xf32> to vector<16xf32>
    %63 = vector.shape_cast %62 : vector<16xf32> to vector<16x1xf32>
    %cst_21 = arith.constant 3.200000e+01 : f32
    %64 = vector.broadcast %cst_21 : f32 to vector<16x1xf32>
    %65 = arith.divf %63, %64 : vector<16x1xf32>
    %66 = vector.broadcast %58 : vector<16x1xf32> to vector<16x32xf32>
    %67 = arith.subf %54, %66 : vector<16x32xf32>
    %cst_22 = arith.constant 9.99999974E-6 : f32
    %68 = vector.broadcast %cst_22 : f32 to vector<16x1xf32>
    %69 = arith.addf %65, %68 : vector<16x1xf32>
    %70 = math.rsqrt %69 : vector<16x1xf32>
    %71 = vector.broadcast %70 : vector<16x1xf32> to vector<16x32xf32>
    %72 = arith.mulf %67, %71 : vector<16x32xf32>
    %73 = vector.broadcast %5 : vector<1x32xf32> to vector<16x32xf32>
    %74 = arith.mulf %72, %73 : vector<16x32xf32>
    %75 = vector.broadcast %6 : vector<1x32xf32> to vector<16x32xf32>
    %76 = arith.addf %74, %75 : vector<16x32xf32>
    %77 = arith.addf %28, %76 : vector<16x32xf32>
    %78 = vector.shape_cast %77 : vector<16x32xf32> to vector<2x8x32xf32>
    %c0_23 = arith.constant 0 : index
    %c0_24 = arith.constant 0 : index
    %c0_25 = arith.constant 0 : index
    %79 = vector.load %arg5[%c0_23, %c0_24, %c0_25] : memref<2x8x32xf32, #tpu.memory_space<vmem>>, vector<2x8x32xf32>
    tpu.vector_store %arg5[%c0_23, %c0_24, %c0_25], %78 {strides = array<i32>} : memref<2x8x32xf32, #tpu.memory_space<vmem>>, vector<2x8x32xf32>,
    return
  }
  func.func @transform_0(%arg0: i32) -> (i32, i32, i32) {
    %c0_i32 = arith.constant 0 : i32
    %c0_i32_0 = arith.constant 0 : i32
    %c0_i32_1 = arith.constant 0 : i32
    return %arg0, %c0_i32, %c0_i32_0 : i32, i32, i32
  }
  func.func @transform_1(%arg0: i32) -> (i32, i32) {
    %c0_i32 = arith.constant 0 : i32
    %c0_i32_0 = arith.constant 0 : i32
    %c0_i32_1 = arith.constant 0 : i32
    return %c0_i32, %c0_i32_0 : i32, i32
  }
  func.func @transform_2(%arg0: i32) -> (i32, i32) {
    %c0_i32 = arith.constant 0 : i32
    %c0_i32_0 = arith.constant 0 : i32
    %c0_i32_1 = arith.constant 0 : i32
    return %c0_i32, %c0_i32_0 : i32, i32
  }
  func.func @transform_3(%arg0: i32) -> (i32, i32) {
    %c0_i32 = arith.constant 0 : i32
    %c0_i32_0 = arith.constant 0 : i32
    %c0_i32_1 = arith.constant 0 : i32
    return %c0_i32, %c0_i32_0 : i32, i32
  }
  func.func @transform_4(%arg0: i32) -> (i32, i32, i32) {
    %c0_i32 = arith.constant 0 : i32
    %c0_i32_0 = arith.constant 0 : i32
    %c0_i32_1 = arith.constant 0 : i32
    return %arg0, %c0_i32, %c0_i32_0 : i32, i32, i32
  }
}

</mosaic_0001>

<llo_original>
// kernel: tpu_custom_call.1
$region0: #{tpu_custom_call.1}
  #allocation0 [shape = 'u32[]', space=smem, size = 0x4, offset = 0x4, fixed_abs, tag = 'smem constant byte address 0x4 - core index']
  #allocation1 [shape = 'u32[144,128]{1,0:T(1,128)}', space=vmem, size = 0x12000, scoped, tag = 'internal scratch']
  %s0 = inlined_call_operand.hbm [shape: f32[2,8,32], index: 0, kind: input, shape index: {}]
  %s1 = inlined_call_operand.hbm [shape: f32[32,96], index: 1, kind: input, shape index: {}]
  %s2 = inlined_call_operand.vmem [shape: f32[1,96], index: 2, kind: input, shape index: {}]
  %s3 = inlined_call_operand.vmem [shape: f32[4,32], index: 3, kind: input, shape index: {}]
  %s4 = inlined_call_operand.hbm [shape: f32[2,8,32], index: 4, kind: output, shape index: {}]
  %s5 = sld [smem:[#allocation0]]
  $region34: #{tpu_custom_call.1} parent=0
    _
  %s7 = ssub.s32 1, %s5
  %s8 = scalar_select 0, %s7, %s5
  $region1: #{tpu_custom_call.1} parent=0
    #allocation2 [shape = 'u8[8192]{0}', space=vmem, size = 0x2000, scoped, tag = 'input window, operand 0, single buffered']
    #allocation3 [shape = 's32[1]{0}', space=sflag, size = 0x4, scoped, tag = 'scoped memory for tpu_custom_call.1']
    #allocation4 [shape = 's32[1]{0}', space=sflag, size = 0x4, scoped, tag = 'scoped memory for tpu_custom_call.1']
    #allocation5 [shape = 'u8[16384]{0}', space=vmem, size = 0x4000, scoped, tag = 'input window, operand 1, single buffered']
    #allocation6 [shape = 's32[1]{0}', space=sflag, size = 0x4, scoped, tag = 'scoped memory for tpu_custom_call.1']
    #allocation7 [shape = 'u8[8192]{0}', space=vmem, size = 0x2000, scoped, tag = 'output window, operand 0, single buffered']
    %9 = vsyncpa [#allocation3], 0
    %10 = vsyncpa [#allocation6], 0
    %11 = vsyncpa [#allocation4], 0
    // Predicated region
    $region2: #{tpu_custom_call.1} parent=1 // pred_check
      _
    $region3: #{tpu_custom_call.1} parent=1 // pred_check_branch
      %13 = sbr.rel (0) target = $region5
    $region4: #{tpu_custom_call.1} parent=1 // pred_region
      %s15 = ssub.s32 256, 256
      %16 = vsyncadd [#allocation3], %s15
      %s17 = sshll.u32 [#allocation2], 4
      %s18 = int_to_ptr.vmem [resolvable:$true] %s17
      %23 = dma.hbm_to_vmem [thread:$0]  %s0, 256, %s18, [#allocation3], 128, 128, 8
    $region5: #{tpu_custom_call.1} parent=1 // pred_fallthru
      _
    // Predicated region
    $region6: #{tpu_custom_call.1} parent=1 // pred_check
      _
    $region7: #{tpu_custom_call.1} parent=1 // pred_check_branch
      %25 = sbr.rel (0) target = $region9
    $region8: #{tpu_custom_call.1} parent=1 // pred_region
      %s27 = ssub.s32 512, 512
      %28 = vsyncadd [#allocation6], %s27
      %s29 = sshll.u32 [#allocation5], 4
      %s30 = int_to_ptr.vmem [resolvable:$true] %s29
      %35 = dma.hbm_to_vmem [thread:$0]  %s1, 512, %s30, [#allocation6], 128, 128, 8
    $region9: #{tpu_custom_call.1} parent=1 // pred_fallthru
      _
    // Predicated region
    $region10: #{tpu_custom_call.1} parent=1 // pred_check
      _
    $region11: #{tpu_custom_call.1} parent=1 // pred_check_branch
      %37 = sbr.rel (0) target = $region13
    $region12: #{tpu_custom_call.1} parent=1 // pred_region
      _
    $region13: #{tpu_custom_call.1} parent=1 // pred_fallthru
      _
    // Predicated region
    $region14: #{tpu_custom_call.1} parent=1 // pred_check
      _
    $region15: #{tpu_custom_call.1} parent=1 // pred_check_branch
      %39 = sbr.rel (0) target = $region17
    $region16: #{tpu_custom_call.1} parent=1 // pred_region
      _
    $region17: #{tpu_custom_call.1} parent=1 // pred_fallthru
      _
    // Predicated region
    $region18: #{tpu_custom_call.1} parent=1 // pred_check
      _
    $region19: #{tpu_custom_call.1} parent=1 // pred_check_branch
      %41 = sbr.rel (0) target = $region21
    $region20: #{tpu_custom_call.1} parent=1 // pred_region
      %42 = dma.done [#allocation3], 256
    $region21: #{tpu_custom_call.1} parent=1 // pred_fallthru
      _
    // Predicated region
    $region22: #{tpu_custom_call.1} parent=1 // pred_check
      _
    $region23: #{tpu_custom_call.1} parent=1 // pred_check_branch
      %44 = sbr.rel (0) target = $region25
    $region24: #{tpu_custom_call.1} parent=1 // pred_region
      %45 = dma.done [#allocation6], 512
    $region25: #{tpu_custom_call.1} parent=1 // pred_fallthru
      _
    %v46 = vld [vmem:[#allocation2] sm:$0xff]
    %v47 = vld [vmem:[#allocation2 + $0x8] sm:$0xff]
    %v48 = vld [vmem:[%s3] sm:$0xf]
    %vm49 = vcmask 261120
    %v50 = vsel %vm49, %v46, 0.0
    %51 = vadd.xlane.f32.xlu0 %v50
    %v52 = vpop.xlane.xlu0 %51
    %v53 = vsel %vm49, %v47, 0.0
    %54 = vadd.xlane.f32.xlu0 %v53
    %v55 = vpop.xlane.xlu0 %54
    %v56 = vrcp.pop 32.0
    %v57 = vmul.f32 %v52, %v56
    %v58 = vmul.f32 %v55, %v56
    %v59 = vsub.f32 %v46, %v57
    %v60 = vsub.f32 %v47, %v58
    %v61 = vmul.f32 %v59, %v59
    %v62 = vmul.f32 %v60, %v60
    %v63 = vsel %vm49, %v61, 0.0
    %64 = vadd.xlane.f32.xlu0 %v63
    %v65 = vpop.xlane.xlu0 %64
    %v66 = vsel %vm49, %v62, 0.0
    %67 = vadd.xlane.f32.xlu0 %v66
    %v68 = vpop.xlane.xlu0 %67
    %v69 = vmul.f32 %v65, %v56
    %v70 = vmul.f32 %v68, %v56
    %v71 = vadd.f32 %v69, 1e-05
    %v72 = vadd.f32 %v70, 1e-05
    %v73 = vrsqrt.pop %v71
    %v74 = vrsqrt.pop %v72
    %v75 = vmul.f32 %v59, %v73
    %v76 = vmul.f32 %v60, %v74
    %v77 = vlaneseq
    %v78 = vshrl.u32 %v77, 7
    %v79 = vsub.s32 0, %v78
    %v80 = vrot.slane %v48, %v79
    %v81 = vmul.f32 %v75, %v80
    %v82 = vmul.f32 %v76, %v80
    %v83 = vlaneseq
    %v84 = vshrl.u32 %v83, 7
    %v85 = vsub.s32 1, %v84
    %v86 = vrot.slane %v48, %v85
    %v87 = vadd.f32 %v81, %v86
    %v88 = vadd.f32 %v82, %v86
    %v89 = vld [vmem:[#allocation5] sm:$0xff]
    %v90 = vld [vmem:[#allocation5 + $0x8] sm:$0xff]
    %v91 = vld [vmem:[#allocation5 + $0x10] sm:$0xff]
    %v92 = vld [vmem:[#allocation5 + $0x18] sm:$0xff]
    %v93 = vld [vmem:[%s2] sm:$0x1]
    %v95 = vlaneseq
    %v96 = vshrl.u32 %v95, 7
    %v97 = vsub.s32 0, %v96
    %v98 = vrot.slane %v93, %v97
    %v101 = vsel %vm49, %v87, 0
    %v104 = vsel %vm49, %v88, 0
    %106 = vmatprep.subr.mxu0 0.0
    %107 = vmatpush1.msra.mxu0 %v89
    %108 = vmatprep.subr.mxu0 0.0
    %109 = vmatpush1.msra.mxu0 %v90
    %110 = vmatprep.subr.mxu0 0.0
    %111 = vmatpush1.msra.mxu0 %v91
    %112 = vmatprep.subr.mxu0 0.0
    %113 = vmatpush1.msra.mxu0 %v92
    %114 = vmatprep.subr.mxu0 0.0
    %115 = vmatpush1.msra.mxu0 0.0
    %116 = vmatprep.subr.mxu0 0.0
    %117 = vmatpush1.msra.mxu0 0.0
    %118 = vmatprep.subr.mxu0 0.0
    %119 = vmatpush1.msra.mxu0 0.0
    %120 = vmatprep.subr.mxu0 0.0
    %121 = vmatpush1.msra.mxu0 0.0
    %122 = vmatprep.subr.mxu0 0.0
    %123 = vmatpush1.msra.mxu0 0.0
    %124 = vmatprep.subr.mxu0 0.0
    %125 = vmatpush1.msra.mxu0 0.0
    %126 = vmatprep.subr.mxu0 0.0
    %127 = vmatpush1.msra.mxu0 0.0
    %128 = vmatprep.subr.mxu0 0.0
    %129 = vmatpush1.msra.mxu0 0.0
    %130 = vmatprep.subr.mxu0 0.0
    %131 = vmatpush1.msra.mxu0 0.0
    %132 = vmatprep.subr.mxu0 0.0
    %133 = vmatpush1.msra.mxu0 0.0
    %134 = vmatprep.subr.mxu0 0.0
    %135 = vmatpush1.msra.mxu0 0.0
    %136 = vmatprep.subr.mxu0 0.0
    %137 = vmatpush1.msra.mxu0 0.0
    %138 = vmatprep.subr.mxu0 0.0
    %139 = vmatpush1.msra.mxu0 0.0
    %140 = vmatprep.subr.mxu0 0.0
    %141 = vmatpush1.msra.mxu0 0.0
    %142 = vmatprep.subr.mxu0 0.0
    %143 = vmatpush1.msra.mxu0 0.0
    %144 = vmatprep.subr.mxu0 0.0
    %145 = vmatpush1.msra.mxu0 0.0
    %146 = vmatprep.subr.mxu0 0.0
    %147 = vmatpush1.msra.mxu0 0.0
    %148 = vmatprep.subr.mxu0 0.0
    %149 = vmatpush1.msra.mxu0 0.0
    %150 = vmatprep.subr.mxu0 0.0
    %151 = vmatpush1.msra.mxu0 0.0
    %152 = vmatprep.subr.mxu0 0.0
    %153 = vmatpush1.msra.mxu0 0.0
    %154 = vmatprep.subr.mxu0 0.0
    %155 = vmatpush1.msra.mxu0 0.0
    %156 = vmatprep.subr.mxu0 0.0
    %157 = vmatpush1.msra.mxu0 0.0
    %158 = vmatprep.subr.mxu0 0.0
    %159 = vmatpush1.msra.mxu0 0.0
    %160 = vmatprep.subr.mxu0 0.0
    %161 = vmatpush1.msra.mxu0 0.0
    %162 = vmatprep.subr.mxu0 0.0
    %163 = vmatpush1.msra.mxu0 0.0
    %164 = vmatprep.subr.mxu0 0.0
    %165 = vmatpush1.msra.mxu0 0.0
    %166 = vmatprep.subr.mxu0 0.0
    %167 = vmatpush1.msra.mxu0 0.0
    %168 = vmatprep.subr.mxu0 0.0
    %169 = vmatpush1.msra.mxu0 0.0
    %170 = vmatprep.mubr.f32.mxu0 0.0
    %171 = vmatmul.mubr.f32.gmra.mrb[0].mxu0 %v101
    %v172 = vpop.f32.mrb[0].mxu0
    %v173 = vadd.f32 %v98, %v172
    %v174 = vpop.f32.mrb[0].mxu0
    %175 = vmatprep.mubr.f32.mxu0 0.0
    %176 = vmatmul.mubr.f32.gmra.mrb[0].mxu0 %v104
    %v177 = vpop.f32.mrb[0].mxu0
    %v178 = vadd.f32 %v98, %v177
    %v179 = vpop.f32.mrb[0].mxu0
    %180 = vdwg.mxu0
    %182 = vrot.lane.b32.xlu0 %v173, 96
    %v183 = vpop.permute.xlu0 %182
    %v184 = vsel %vm49, %v173, 0
    %v186 = vsel %vm49, %v183, 0
    %188 = vmatprep.subr.mxu0 0.0
    %189 = vmatpush1.xpose.msra.mxu0 %v186
    %190 = vmatprep.subr.mxu0 0.0
    %191 = vmatpush1.xpose.msra.mxu0 0.0
    %192 = vmatprep.subr.mxu0 0.0
    %193 = vmatpush1.xpose.msra.mxu0 0.0
    %194 = vmatprep.subr.mxu0 0.0
    %195 = vmatpush1.xpose.msra.mxu0 0.0
    %196 = vmatprep.subr.mxu0 0.0
    %197 = vmatpush1.xpose.msra.mxu0 0.0
    %198 = vmatprep.subr.mxu0 0.0
    %199 = vmatpush1.xpose.msra.mxu0 0.0
    %200 = vmatprep.subr.mxu0 0.0
    %201 = vmatpush1.xpose.msra.mxu0 0.0
    %202 = vmatprep.subr.mxu0 0.0
    %203 = vmatpush1.xpose.msra.mxu0 0.0
    %204 = vmatprep.subr.mxu0 0.0
    %205 = vmatpush1.xpose.msra.mxu0 0.0
    %206 = vmatprep.subr.mxu0 0.0
    %207 = vmatpush1.xpose.msra.mxu0 0.0
    %208 = vmatprep.subr.mxu0 0.0
    %209 = vmatpush1.xpose.msra.mxu0 0.0
    %210 = vmatprep.subr.mxu0 0.0
    %211 = vmatpush1.xpose.msra.mxu0 0.0
    %212 = vmatprep.subr.mxu0 0.0
    %213 = vmatpush1.xpose.msra.mxu0 0.0
    %214 = vmatprep.subr.mxu0 0.0
    %215 = vmatpush1.xpose.msra.mxu0 0.0
    %216 = vmatprep.subr.mxu0 0.0
    %217 = vmatpush1.xpose.msra.mxu0 0.0
    %218 = vmatprep.subr.mxu0 0.0
    %219 = vmatpush1.xpose.msra.mxu0 0.0
    %220 = vmatprep.subr.mxu0 0.0
    %221 = vmatpush1.xpose.msra.mxu0 0.0
    %222 = vmatprep.subr.mxu0 0.0
    %223 = vmatpush1.xpose.msra.mxu0 0.0
    %224 = vmatprep.subr.mxu0 0.0
    %225 = vmatpush1.xpose.msra.mxu0 0.0
    %226 = vmatprep.subr.mxu0 0.0
    %227 = vmatpush1.xpose.msra.mxu0 0.0
    %228 = vmatprep.subr.mxu0 0.0
    %229 = vmatpush1.xpose.msra.mxu0 0.0
    %230 = vmatprep.subr.mxu0 0.0
    %231 = vmatpush1.xpose.msra.mxu0 0.0
    %232 = vmatprep.subr.mxu0 0.0
    %233 = vmatpush1.xpose.msra.mxu0 0.0
    %234 = vmatprep.subr.mxu0 0.0
    %235 = vmatpush1.xpose.msra.mxu0 0.0
    %236 = vmatprep.subr.mxu0 0.0
    %237 = vmatpush1.xpose.msra.mxu0 0.0
    %238 = vmatprep.subr.mxu0 0.0
    %239 = vmatpush1.xpose.msra.mxu0 0.0
    %240 = vmatprep.subr.mxu0 0.0
    %241 = vmatpush1.xpose.msra.mxu0 0.0
    %242 = vmatprep.subr.mxu0 0.0
    %243 = vmatpush1.xpose.msra.mxu0 0.0
    %244 = vmatprep.subr.mxu0 0.0
    %245 = vmatpush1.xpose.msra.mxu0 0.0
    %246 = vmatprep.subr.mxu0 0.0
    %247 = vmatpush1.xpose.msra.mxu0 0.0
    %248 = vmatprep.subr.mxu0 0.0
    %249 = vmatpush1.xpose.msra.mxu0 0.0
    %250 = vmatprep.subr.mxu0 0.0
    %251 = vmatpush1.xpose.msra.mxu0 0.0
    %252 = vmatprep.mubr.f32.mxu0 0.0
    %253 = vmatmul.mubr.f32.gmra.mrb[0].mxu0 %v184
    %v254 = vpop.f32.mrb[0].mxu0
    %v255 = vadd.f32 0.0, %v254
    %v256 = vpop.f32.mrb[0].mxu0
    %257 = vdwg.mxu0
    %259 = vrot.lane.b32.xlu0 %v178, 96
    %v260 = vpop.permute.xlu0 %259
    %v261 = vsel %vm49, %v178, 0
    %v263 = vsel %vm49, %v260, 0
    %265 = vmatprep.subr.mxu0 0.0
    %266 = vmatpush1.xpose.msra.mxu0 %v263
    %267 = vmatprep.subr.mxu0 0.0
    %268 = vmatpush1.xpose.msra.mxu0 0.0
    %269 = vmatprep.subr.mxu0 0.0
    %270 = vmatpush1.xpose.msra.mxu0 0.0
    %271 = vmatprep.subr.mxu0 0.0
    %272 = vmatpush1.xpose.msra.mxu0 0.0
    %273 = vmatprep.subr.mxu0 0.0
    %274 = vmatpush1.xpose.msra.mxu0 0.0
    %275 = vmatprep.subr.mxu0 0.0
    %276 = vmatpush1.xpose.msra.mxu0 0.0
    %277 = vmatprep.subr.mxu0 0.0
    %278 = vmatpush1.xpose.msra.mxu0 0.0
    %279 = vmatprep.subr.mxu0 0.0
    %280 = vmatpush1.xpose.msra.mxu0 0.0
    %281 = vmatprep.subr.mxu0 0.0
    %282 = vmatpush1.xpose.msra.mxu0 0.0
    %283 = vmatprep.subr.mxu0 0.0
    %284 = vmatpush1.xpose.msra.mxu0 0.0
    %285 = vmatprep.subr.mxu0 0.0
    %286 = vmatpush1.xpose.msra.mxu0 0.0
    %287 = vmatprep.subr.mxu0 0.0
    %288 = vmatpush1.xpose.msra.mxu0 0.0
    %289 = vmatprep.subr.mxu0 0.0
    %290 = vmatpush1.xpose.msra.mxu0 0.0
    %291 = vmatprep.subr.mxu0 0.0
    %292 = vmatpush1.xpose.msra.mxu0 0.0
    %293 = vmatprep.subr.mxu0 0.0
    %294 = vmatpush1.xpose.msra.mxu0 0.0
    %295 = vmatprep.subr.mxu0 0.0
    %296 = vmatpush1.xpose.msra.mxu0 0.0
    %297 = vmatprep.subr.mxu0 0.0
    %298 = vmatpush1.xpose.msra.mxu0 0.0
    %299 = vmatprep.subr.mxu0 0.0
    %300 = vmatpush1.xpose.msra.mxu0 0.0
    %301 = vmatprep.subr.mxu0 0.0
    %302 = vmatpush1.xpose.msra.mxu0 0.0
    %303 = vmatprep.subr.mxu0 0.0
    %304 = vmatpush1.xpose.msra.mxu0 0.0
    %305 = vmatprep.subr.mxu0 0.0
    %306 = vmatpush1.xpose.msra.mxu0 0.0
    %307 = vmatprep.subr.mxu0 0.0
    %308 = vmatpush1.xpose.msra.mxu0 0.0
    %309 = vmatprep.subr.mxu0 0.0
    %310 = vmatpush1.xpose.msra.mxu0 0.0
    %311 = vmatprep.subr.mxu0 0.0
    %312 = vmatpush1.xpose.msra.mxu0 0.0
    %313 = vmatprep.subr.mxu0 0.0
    %314 = vmatpush1.xpose.msra.mxu0 0.0
    %315 = vmatprep.subr.mxu0 0.0
    %316 = vmatpush1.xpose.msra.mxu0 0.0
    %317 = vmatprep.subr.mxu0 0.0
    %318 = vmatpush1.xpose.msra.mxu0 0.0
    %319 = vmatprep.subr.mxu0 0.0
    %320 = vmatpush1.xpose.msra.mxu0 0.0
    %321 = vmatprep.subr.mxu0 0.0
    %322 = vmatpush1.xpose.msra.mxu0 0.0
    %323 = vmatprep.subr.mxu0 0.0
    %324 = vmatpush1.xpose.msra.mxu0 0.0
    %325 = vmatprep.subr.mxu0 0.0
    %326 = vmatpush1.xpose.msra.mxu0 0.0
    %327 = vmatprep.subr.mxu0 0.0
    %328 = vmatpush1.xpose.msra.mxu0 0.0
    %329 = vmatprep.mubr.f32.mxu0 0.0
    %330 = vmatmul.mubr.f32.gmra.mrb[0].mxu0 %v261
    %v331 = vpop.f32.mrb[0].mxu0
    %v332 = vadd.f32 0.0, %v331
    %v333 = vpop.f32.mrb[0].mxu0
    %334 = vdwg.mxu0
    %v335 = vmul.f32 %v255, 0.17677669
    %v336 = vmul.f32 %v332, 0.17677669
    %vm337 = vcmask 64512
    %v338 = vsel %vm337, %v335, -inf
    %339 = vmax.xlane.f32.xlu0 %v338
    %v340 = vpop.xlane.xlu0 %339
    %v341 = vsel %vm337, %v336, -inf
    %342 = vmax.xlane.f32.xlu0 %v341
    %v343 = vpop.xlane.xlu0 %342
    %v344 = vsub.f32 %v335, %v340
    %v345 = vsub.f32 %v336, %v343
    %v346 = vmul.f32 %v344, 1.442695
    %v347 = vpow.pop %v346
    %v348 = vmul.f32 %v345, 1.442695
    %v349 = vpow.pop %v348
    %v350 = vsel %vm337, %v347, 0.0
    %351 = vadd.xlane.f32.xlu0 %v350
    %v352 = vpop.xlane.xlu0 %351
    %v353 = vsel %vm337, %v349, 0.0
    %354 = vadd.xlane.f32.xlu0 %v353
    %v355 = vpop.xlane.xlu0 %354
    %v356 = vrcp.pop %v352
    %v357 = vrcp.pop %v355
    %v358 = vmul.f32 %v347, %v356
    %v359 = vmul.f32 %v349, %v357
    %360 = vrot.lane.b32.xlu0 %v173, 64
    %v361 = vpop.permute.xlu0 %360
    %v364 = vsel %vm337, %v358, 0
    %366 = vmatprep.subr.mxu0 0.0
    %367 = vmatpush1.msra.mxu0 %v361
    %368 = vmatprep.subr.mxu0 0.0
    %369 = vmatpush1.msra.mxu0 0.0
    %370 = vmatprep.subr.mxu0 0.0
    %371 = vmatpush1.msra.mxu0 0.0
    %372 = vmatprep.subr.mxu0 0.0
    %373 = vmatpush1.msra.mxu0 0.0
    %374 = vmatprep.subr.mxu0 0.0
    %375 = vmatpush1.msra.mxu0 0.0
    %376 = vmatprep.subr.mxu0 0.0
    %377 = vmatpush1.msra.mxu0 0.0
    %378 = vmatprep.subr.mxu0 0.0
    %379 = vmatpush1.msra.mxu0 0.0
    %380 = vmatprep.subr.mxu0 0.0
    %381 = vmatpush1.msra.mxu0 0.0
    %382 = vmatprep.subr.mxu0 0.0
    %383 = vmatpush1.msra.mxu0 0.0
    %384 = vmatprep.subr.mxu0 0.0
    %385 = vmatpush1.msra.mxu0 0.0
    %386 = vmatprep.subr.mxu0 0.0
    %387 = vmatpush1.msra.mxu0 0.0
    %388 = vmatprep.subr.mxu0 0.0
    %389 = vmatpush1.msra.mxu0 0.0
    %390 = vmatprep.subr.mxu0 0.0
    %391 = vmatpush1.msra.mxu0 0.0
    %392 = vmatprep.subr.mxu0 0.0
    %393 = vmatpush1.msra.mxu0 0.0
    %394 = vmatprep.subr.mxu0 0.0
    %395 = vmatpush1.msra.mxu0 0.0
    %396 = vmatprep.subr.mxu0 0.0
    %397 = vmatpush1.msra.mxu0 0.0
    %398 = vmatprep.subr.mxu0 0.0
    %399 = vmatpush1.msra.mxu0 0.0
    %400 = vmatprep.subr.mxu0 0.0
    %401 = vmatpush1.msra.mxu0 0.0
    %402 = vmatprep.subr.mxu0 0.0
    %403 = vmatpush1.msra.mxu0 0.0
    %404 = vmatprep.subr.mxu0 0.0
    %405 = vmatpush1.msra.mxu0 0.0
    %406 = vmatprep.subr.mxu0 0.0
    %407 = vmatpush1.msra.mxu0 0.0
    %408 = vmatprep.subr.mxu0 0.0
    %409 = vmatpush1.msra.mxu0 0.0
    %410 = vmatprep.subr.mxu0 0.0
    %411 = vmatpush1.msra.mxu0 0.0
    %412 = vmatprep.subr.mxu0 0.0
    %413 = vmatpush1.msra.mxu0 0.0
    %414 = vmatprep.subr.mxu0 0.0
    %415 = vmatpush1.msra.mxu0 0.0
    %416 = vmatprep.subr.mxu0 0.0
    %417 = vmatpush1.msra.mxu0 0.0
    %418 = vmatprep.subr.mxu0 0.0
    %419 = vmatpush1.msra.mxu0 0.0
    %420 = vmatprep.subr.mxu0 0.0
    %421 = vmatpush1.msra.mxu0 0.0
    %422 = vmatprep.subr.mxu0 0.0
    %423 = vmatpush1.msra.mxu0 0.0
    %424 = vmatprep.subr.mxu0 0.0
    %425 = vmatpush1.msra.mxu0 0.0
    %426 = vmatprep.subr.mxu0 0.0
    %427 = vmatpush1.msra.mxu0 0.0
    %428 = vmatprep.subr.mxu0 0.0
    %429 = vmatpush1.msra.mxu0 0.0
    %430 = vmatprep.mubr.f32.mxu0 0.0
    %431 = vmatmul.mubr.f32.gmra.mrb[0].mxu0 %v364
    %v432 = vpop.f32.mrb[0].mxu0
    %v433 = vadd.f32 0.0, %v432
    %v434 = vpop.f32.mrb[0].mxu0
    %435 = vdwg.mxu0
    %436 = vrot.lane.b32.xlu0 %v178, 64
    %v437 = vpop.permute.xlu0 %436
    %v440 = vsel %vm337, %v359, 0
    %442 = vmatprep.subr.mxu0 0.0
    %443 = vmatpush1.msra.mxu0 %v437
    %444 = vmatprep.subr.mxu0 0.0
    %445 = vmatpush1.msra.mxu0 0.0
    %446 = vmatprep.subr.mxu0 0.0
    %447 = vmatpush1.msra.mxu0 0.0
    %448 = vmatprep.subr.mxu0 0.0
    %449 = vmatpush1.msra.mxu0 0.0
    %450 = vmatprep.subr.mxu0 0.0
    %451 = vmatpush1.msra.mxu0 0.0
    %452 = vmatprep.subr.mxu0 0.0
    %453 = vmatpush1.msra.mxu0 0.0
    %454 = vmatprep.subr.mxu0 0.0
    %455 = vmatpush1.msra.mxu0 0.0
    %456 = vmatprep.subr.mxu0 0.0
    %457 = vmatpush1.msra.mxu0 0.0
    %458 = vmatprep.subr.mxu0 0.0
    %459 = vmatpush1.msra.mxu0 0.0
    %460 = vmatprep.subr.mxu0 0.0
    %461 = vmatpush1.msra.mxu0 0.0
    %462 = vmatprep.subr.mxu0 0.0
    %463 = vmatpush1.msra.mxu0 0.0
    %464 = vmatprep.subr.mxu0 0.0
    %465 = vmatpush1.msra.mxu0 0.0
    %466 = vmatprep.subr.mxu0 0.0
    %467 = vmatpush1.msra.mxu0 0.0
    %468 = vmatprep.subr.mxu0 0.0
    %469 = vmatpush1.msra.mxu0 0.0
    %470 = vmatprep.subr.mxu0 0.0
    %471 = vmatpush1.msra.mxu0 0.0
    %472 = vmatprep.subr.mxu0 0.0
    %473 = vmatpush1.msra.mxu0 0.0
    %474 = vmatprep.subr.mxu0 0.0
    %475 = vmatpush1.msra.mxu0 0.0
    %476 = vmatprep.subr.mxu0 0.0
    %477 = vmatpush1.msra.mxu0 0.0
    %478 = vmatprep.subr.mxu0 0.0
    %479 = vmatpush1.msra.mxu0 0.0
    %480 = vmatprep.subr.mxu0 0.0
    %481 = vmatpush1.msra.mxu0 0.0
    %482 = vmatprep.subr.mxu0 0.0
    %483 = vmatpush1.msra.mxu0 0.0
    %484 = vmatprep.subr.mxu0 0.0
    %485 = vmatpush1.msra.mxu0 0.0
    %486 = vmatprep.subr.mxu0 0.0
    %487 = vmatpush1.msra.mxu0 0.0
    %488 = vmatprep.subr.mxu0 0.0
    %489 = vmatpush1.msra.mxu0 0.0
    %490 = vmatprep.subr.mxu0 0.0
    %491 = vmatpush1.msra.mxu0 0.0
    %492 = vmatprep.subr.mxu0 0.0
    %493 = vmatpush1.msra.mxu0 0.0
    %494 = vmatprep.subr.mxu0 0.0
    %495 = vmatpush1.msra.mxu0 0.0
    %496 = vmatprep.subr.mxu0 0.0
    %497 = vmatpush1.msra.mxu0 0.0
    %498 = vmatprep.subr.mxu0 0.0
    %499 = vmatpush1.msra.mxu0 0.0
    %500 = vmatprep.subr.mxu0 0.0
    %501 = vmatpush1.msra.mxu0 0.0
    %502 = vmatprep.subr.mxu0 0.0
    %503 = vmatpush1.msra.mxu0 0.0
    %504 = vmatprep.subr.mxu0 0.0
    %505 = vmatpush1.msra.mxu0 0.0
    %506 = vmatprep.mubr.f32.mxu0 0.0
    %507 = vmatmul.mubr.f32.gmra.mrb[0].mxu0 %v440
    %v508 = vpop.f32.mrb[0].mxu0
    %v509 = vadd.f32 0.0, %v508
    %v510 = vpop.f32.mrb[0].mxu0
    %511 = vdwg.mxu0
    %v512 = vsel %vm49, %v433, 0.0
    %513 = vadd.xlane.f32.xlu0 %v512
    %v514 = vpop.xlane.xlu0 %513
    %v515 = vsel %vm49, %v509, 0.0
    %516 = vadd.xlane.f32.xlu0 %v515
    %v517 = vpop.xlane.xlu0 %516
    %v518 = vmul.f32 %v514, %v56
    %v519 = vmul.f32 %v517, %v56
    %v520 = vsub.f32 %v433, %v518
    %v521 = vsub.f32 %v509, %v519
    %v522 = vmul.f32 %v520, %v520
    %v523 = vmul.f32 %v521, %v521
    %v524 = vsel %vm49, %v522, 0.0
    %525 = vadd.xlane.f32.xlu0 %v524
    %v526 = vpop.xlane.xlu0 %525
    %v527 = vsel %vm49, %v523, 0.0
    %528 = vadd.xlane.f32.xlu0 %v527
    %v529 = vpop.xlane.xlu0 %528
    %v530 = vmul.f32 %v526, %v56
    %v531 = vmul.f32 %v529, %v56
    %v532 = vadd.f32 %v530, 1e-05
    %v533 = vadd.f32 %v531, 1e-05
    %v534 = vrsqrt.pop %v532
    %v535 = vrsqrt.pop %v533
    %v536 = vmul.f32 %v520, %v534
    %v537 = vmul.f32 %v521, %v535
    %v538 = vlaneseq
    %v539 = vshrl.u32 %v538, 7
    %v540 = vsub.s32 2, %v539
    %v541 = vrot.slane %v48, %v540
    %v542 = vmul.f32 %v536, %v541
    %v543 = vmul.f32 %v537, %v541
    %v544 = vlaneseq
    %v545 = vshrl.u32 %v544, 7
    %v546 = vsub.s32 3, %v545
    %v547 = vrot.slane %v48, %v546
    %v548 = vadd.f32 %v542, %v547
    %v549 = vadd.f32 %v543, %v547
    %v550 = vadd.f32 %v87, %v548
    %v551 = vadd.f32 %v88, %v549
    %552 = vst.msk [vmem:[#allocation7] sm:$0xff] %vm49, %v550
    %553 = vst.msk [vmem:[#allocation7 + $0x8] sm:$0xff] %vm49, %v551
    // Predicated region
    $region26: #{tpu_custom_call.1} parent=1 // pred_check
      _
    $region27: #{tpu_custom_call.1} parent=1 // pred_check_branch
      %555 = sbr.rel (0) target = $region29
    $region28: #{tpu_custom_call.1} parent=1 // pred_region
      %s557 = ssub.s32 256, 256
      %558 = vsyncadd [#allocation4], %s557
      %s559 = sshll.u32 [#allocation7], 4
      %s560 = int_to_ptr.vmem [resolvable:$true] %s559
      %565 = dma.vmem_to_hbm [thread:$0]  %s560, 256, %s4, [#allocation4], 128, 128, 8
    $region29: #{tpu_custom_call.1} parent=1 // pred_fallthru
      _
    // Predicated region
    $region30: #{tpu_custom_call.1} parent=1 // pred_check
      _
    $region31: #{tpu_custom_call.1} parent=1 // pred_check_branch
      %567 = sbr.rel (0) target = $region33
    $region32: #{tpu_custom_call.1} parent=1 // pred_region
      %568 = dma.done [#allocation4], 256
    $region33: #{tpu_custom_call.1} parent=1 // pred_fallthru
      _
    %569 = vsyncpa [#allocation3], 1
    %570 = vsyncpa [#allocation6], 1
    %571 = vsyncpa [#allocation4], 1

</llo_original>
